<compile_context>
chip_gen: v5e
topology: v5e:2x2
jax: 0.10.0
libtpu: 0.0.40
codegen_flags: <defaults>
</compile_context>

<pallas_src>
import jax
import jax.numpy as jnp
from jax.experimental import pallas as pl
from jax.experimental.pallas import tpu as pltpu  # noqa: F401  (TPU backend import)


def _gmm_kernel(var_ref, phi_ref, var_out_ref, phi_out_ref):
    """var_ref: (n_clusters, d_hidden); phi_ref: (1, n_clusters)."""
    # Softplus with torch's threshold=20 guard: softplus(x) = x for x > 20,
    # log1p(exp(x)) otherwise.  The min() keeps exp() from overflowing on the
    # branch that gets discarded by the where().
    v = var_ref[...]
    var_out_ref[...] = jnp.where(
        v > 20.0, v, jnp.log1p(jnp.exp(jnp.minimum(v, 20.0)))
    ).astype(var_out_ref.dtype)

    # Numerically-stable softmax over the cluster axis (last axis of (1, C)).
    p = phi_ref[...].astype(jnp.float32)
    m = jnp.max(p, axis=-1, keepdims=True)
    e = jnp.exp(p - m)
    inv_den = pl.reciprocal(jnp.sum(e, axis=-1, keepdims=True), approx=True)
    phi_out_ref[...] = (e * inv_den).astype(phi_out_ref.dtype)


def gmm_layer_forward(mu_c_unscaled, var_c_unscaled, phi_c_unscaled):
    """Pallas implementation of GMMLayer.forward().

    Args:
      mu_c_unscaled:  (n_clusters, d_hidden) float32
      var_c_unscaled: (n_clusters, d_hidden) float32
      phi_c_unscaled: (n_clusters,) float32

    Returns:
      (mu_c, var_c, phi_c) with the same shapes/dtypes as the PyTorch module.
    """
    n_clusters, d_hidden = mu_c_unscaled.shape
    assert var_c_unscaled.shape == (n_clusters, d_hidden)
    assert phi_c_unscaled.shape == (n_clusters,)

    var_dtype = var_c_unscaled.dtype
    phi_dtype = phi_c_unscaled.dtype

    # (n_clusters,) -> (1, n_clusters): layout-only reshape so the kernel works
    # on a 2-D (sublane, lane) tile; softmax runs over the lane axis.
    phi2d = phi_c_unscaled.reshape(1, n_clusters)

    var_spec = pl.BlockSpec((n_clusters, d_hidden), lambda: (0, 0))
    phi_spec = pl.BlockSpec((1, n_clusters), lambda: (0, 0))

    var_c, phi_c2d = pl.pallas_call(
        _gmm_kernel,
        out_shape=(
            jax.ShapeDtypeStruct((n_clusters, d_hidden), var_dtype),
            jax.ShapeDtypeStruct((1, n_clusters), phi_dtype),
        ),
        in_specs=[var_spec, phi_spec],
        out_specs=(var_spec, phi_spec),
    )(var_c_unscaled, phi2d)

    # mu_c is a pure identity: return the parameter directly (zero data movement).
    return mu_c_unscaled, var_c, phi_c2d.reshape(n_clusters)


def _reference(mu, var, phi):
    return mu, jax.nn.softplus(var), jax.nn.softmax(phi, axis=0)


if __name__ == "__main__":
    d_hidden = 32
    n_clusters = 8

    key = jax.random.PRNGKey(0)
    k_mu, k_var, k_phi = jax.random.split(key, 3)
    mu_c_unscaled = jax.random.normal(k_mu, (n_clusters, d_hidden), dtype=jnp.float32)
    var_c_unscaled = jax.random.normal(k_var, (n_clusters, d_hidden), dtype=jnp.float32)
    phi_c_unscaled = jax.random.normal(k_phi, (n_clusters,), dtype=jnp.float32)

    mu_c, var_c, phi_c = gmm_layer_forward(
        mu_c_unscaled, var_c_unscaled, phi_c_unscaled
    )
    jax.block_until_ready((mu_c, var_c, phi_c))

    # Check against pure-JAX reference.
    mu_ref, var_ref, phi_ref = _reference(
        mu_c_unscaled, var_c_unscaled, phi_c_unscaled
    )
    assert mu_c.shape == (n_clusters, d_hidden)
    assert var_c.shape == (n_clusters, d_hidden)
    assert phi_c.shape == (n_clusters,)
    assert jnp.allclose(mu_c, mu_ref, atol=1e-6)
    assert jnp.allclose(var_c, var_ref, atol=1e-5)
    # rtol loosened slightly to cover the approx (EUP vrcp) reciprocal.
    assert jnp.allclose(phi_c, phi_ref, atol=1e-5, rtol=1e-4)

    print("KERNEL_OK")
</pallas_src>

<mosaic_0001>
module attributes {stable_mosaic.version = 11 : i64} {
  func.func @_gmm_kernel(%arg0: memref<8x32xf32, #tpu.memory_space<vmem>>, %arg1: memref<1x8xf32, #tpu.memory_space<vmem>>, %arg2: memref<8x32xf32, #tpu.memory_space<vmem>>, %arg3: memref<1x8xf32, #tpu.memory_space<vmem>>) attributes {dimension_semantics = [], scalar_prefetch = 0 : i64, scratch_operands = 0 : i64, tpu.core_type = #tpu.core_type<tc>} {
    %c0 = arith.constant 0 : index
    %c0_0 = arith.constant 0 : index
    %0 = vector.load %arg0[%c0, %c0_0] : memref<8x32xf32, #tpu.memory_space<vmem>>, vector<8x32xf32>
    %cst = arith.constant 2.000000e+01 : f32
    %1 = vector.broadcast %cst : f32 to vector<8x32xf32>
    %2 = arith.cmpf ogt, %0, %1 : vector<8x32xf32>
    %cst_1 = arith.constant 2.000000e+01 : f32
    %3 = vector.broadcast %cst_1 : f32 to vector<8x32xf32>
    %4 = arith.minimumf %0, %3 : vector<8x32xf32>
    %5 = math.exp %4 : vector<8x32xf32>
    %6 = math.log1p %5 : vector<8x32xf32>
    %7 = arith.select %2, %0, %6 : vector<8x32xi1>, vector<8x32xf32>
    %c0_2 = arith.constant 0 : index
    %c0_3 = arith.constant 0 : index
    %8 = vector.load %arg2[%c0_2, %c0_3] : memref<8x32xf32, #tpu.memory_space<vmem>>, vector<8x32xf32>
    tpu.vector_store %arg2[%c0_2, %c0_3], %7 {strides = array<i32>} : memref<8x32xf32, #tpu.memory_space<vmem>>, vector<8x32xf32>,
    %c0_4 = arith.constant 0 : index
    %c0_5 = arith.constant 0 : index
    %9 = vector.load %arg1[%c0_4, %c0_5] : memref<1x8xf32, #tpu.memory_space<vmem>>, vector<1x8xf32>
    %cst_6 = arith.constant dense<0xFF800000> : vector<1xf32>
    %10 = vector.multi_reduction <maximumf>, %9, %cst_6 [1] : vector<1x8xf32> to vector<1xf32>
    %11 = vector.shape_cast %10 : vector<1xf32> to vector<1x1xf32>
    %12 = vector.broadcast %11 : vector<1x1xf32> to vector<1x8xf32>
    %13 = arith.subf %9, %12 : vector<1x8xf32>
    %14 = math.exp %13 : vector<1x8xf32>
    %cst_7 = arith.constant dense<0.000000e+00> : vector<1xf32>
    %15 = vector.multi_reduction <add>, %14, %cst_7 [1] : vector<1x8xf32> to vector<1xf32>
    %16 = vector.shape_cast %15 : vector<1xf32> to vector<1x1xf32>
    %17 = tpu.reciprocal %16 {approx = true} : vector<1x1xf32> -> vector<1x1xf32>
    %18 = vector.broadcast %17 : vector<1x1xf32> to vector<1x8xf32>
    %19 = arith.mulf %14, %18 : vector<1x8xf32>
    %c0_8 = arith.constant 0 : index
    %c0_9 = arith.constant 0 : index
    %20 = vector.load %arg3[%c0_8, %c0_9] : memref<1x8xf32, #tpu.memory_space<vmem>>, vector<1x8xf32>
    tpu.vector_store %arg3[%c0_8, %c0_9], %19 {strides = array<i32>} : memref<1x8xf32, #tpu.memory_space<vmem>>, vector<1x8xf32>,
    return
  }
}

</mosaic_0001>

<llo_original>
// kernel: tpu_custom_call.1
$region0: #{tpu_custom_call.1}
  #allocation0 [shape = 'u32[]', space=smem, size = 0x4, offset = 0x4, fixed_abs, tag = 'smem constant byte address 0x4 - core index']
  #allocation1 [shape = 'u32[72,128]{1,0:T(1,128)}', space=vmem, size = 0x9000, scoped, tag = 'internal scratch']
  %s0 = inlined_call_operand.hbm [shape: f32[8,32], index: 0, kind: input, shape index: {}]
  %s1 = inlined_call_operand.hbm [shape: f32[1,8], index: 1, kind: input, shape index: {}]
  %s2 = inlined_call_operand.hbm [shape: f32[8,32], index: 2, kind: output, shape index: {0}]
  %s3 = inlined_call_operand.hbm [shape: f32[1,8], index: 3, kind: output, shape index: {1}]
  %4 = xla_tuple %s2, %s3
  %s5 = sld [smem:[#allocation0]]
  $region34: #{tpu_custom_call.1} parent=0
    _
  %s7 = ssub.s32 1, %s5
  %s8 = scalar_select 0, %s7, %s5
  $region1: #{tpu_custom_call.1} parent=0
    #allocation2 [shape = 'u8[4096]{0}', space=vmem, size = 0x1000, scoped, tag = 'input window, operand 0, single buffered']
    #allocation3 [shape = 's32[1]{0}', space=sflag, size = 0x4, scoped, tag = 'scoped memory for tpu_custom_call.1']
    #allocation4 [shape = 's32[1]{0}', space=sflag, size = 0x4, scoped, tag = 'scoped memory for tpu_custom_call.1']
    #allocation5 [shape = 'u8[512]{0}', space=vmem, size = 0x400, scoped, tag = 'input window, operand 1, single buffered']
    #allocation6 [shape = 's32[1]{0}', space=sflag, size = 0x4, scoped, tag = 'scoped memory for tpu_custom_call.1']
    #allocation7 [shape = 'u8[4096]{0}', space=vmem, size = 0x1000, scoped, tag = 'output window, operand 0, single buffered']
    #allocation8 [shape = 'u8[512]{0}', space=vmem, size = 0x400, scoped, tag = 'output window, operand 1, single buffered']
    #allocation9 [shape = 's32[1]{0}', space=sflag, size = 0x4, scoped, tag = 'scoped memory for tpu_custom_call.1']
    %9 = vsyncpa [#allocation3], 0
    %10 = vsyncpa [#allocation6], 0
    %11 = vsyncpa [#allocation4], 0
    %12 = vsyncpa [#allocation9], 0
    // Predicated region
    $region2: #{tpu_custom_call.1} parent=1 // pred_check
      _
    $region3: #{tpu_custom_call.1} parent=1 // pred_check_branch
      %14 = sbr.rel (0) target = $region5
    $region4: #{tpu_custom_call.1} parent=1 // pred_region
      %16 = vsyncadd [#allocation3], 0
      %s18 = sshll.u32 %s0, 4
      %s19 = int_to_ptr.hbm [resolvable:$true] %s18
      %s20 = sshll.u32 [#allocation2], 4
      %s21 = int_to_ptr.vmem [resolvable:$true] %s20
      %23 = dma.hbm_to_vmem [thread:$0]  %s19, 128, %s21, [#allocation3]
    $region5: #{tpu_custom_call.1} parent=1 // pred_fallthru
      _
    // Predicated region
    $region6: #{tpu_custom_call.1} parent=1 // pred_check
      _
    $region7: #{tpu_custom_call.1} parent=1 // pred_check_branch
      %25 = sbr.rel (0) target = $region9
    $region8: #{tpu_custom_call.1} parent=1 // pred_region
      %27 = vsyncadd [#allocation6], 0
      %s29 = sshll.u32 %s1, 4
      %s30 = int_to_ptr.hbm [resolvable:$true] %s29
      %s31 = sshll.u32 [#allocation5], 4
      %s32 = int_to_ptr.vmem [resolvable:$true] %s31
      %34 = dma.hbm_to_vmem [thread:$0]  %s30, 16, %s32, [#allocation6]
    $region9: #{tpu_custom_call.1} parent=1 // pred_fallthru
      _
    // Predicated region
    $region10: #{tpu_custom_call.1} parent=1 // pred_check
      _
    $region11: #{tpu_custom_call.1} parent=1 // pred_check_branch
      %36 = sbr.rel (0) target = $region13
    $region12: #{tpu_custom_call.1} parent=1 // pred_region
      %38 = dma.done [#allocation3], 128
    $region13: #{tpu_custom_call.1} parent=1 // pred_fallthru
      _
    // Predicated region
    $region14: #{tpu_custom_call.1} parent=1 // pred_check
      _
    $region15: #{tpu_custom_call.1} parent=1 // pred_check_branch
      %40 = sbr.rel (0) target = $region17
    $region16: #{tpu_custom_call.1} parent=1 // pred_region
      %42 = dma.done [#allocation6], 16
    $region17: #{tpu_custom_call.1} parent=1 // pred_fallthru
      _
    %v43 = vld [vmem:[#allocation2] sm:$0xff]
    %vm44 = vcmp.gt.f32.partialorder %v43, 20.0
    %v45 = vmin.f32 %v43, 20.0
    %v46 = vmul.f32 %v45, 1.442695
    %v47 = vpow.pop %v46
    %v48 = vadd.f32 %v47, 1.0
    %v49 = vlog2.pop %v48
    %v50 = vmul.f32 %v49, 0.6931472
    %v51 = vmul.f32 -0.5, %v47
    %v52 = vadd.f32 %v51, 1.0
    %v53 = vmul.f32 %v52, %v47
    %v54 = vand.u32 2147483647, %v47
    %vm55 = vcmp.lt.f32.partialorder %v54, 0.0004427343
    %v56 = vsel %vm55, %v53, %v50
    %v57 = vsel %vm44, %v43, %v56
    %vm58 = vcmask 261120
    %59 = vst.msk [vmem:[#allocation7] sm:$0xff] %vm58, %v57
    %v60 = vld [vmem:[#allocation5] sm:$0x1]
    %vm61 = vcmask 57344
    %v62 = vsel %vm61, %v60, -inf
    %63 = vmax.xlane.f32.xlu0 %v62
    %v64 = vpop.xlane.xlu0 %63
    %v65 = vsub.f32 %v60, %v64
    %v66 = vmul.f32 %v65, 1.442695
    %v67 = vpow.pop %v66
    %v68 = vsel %vm61, %v67, 0.0
    %69 = vadd.xlane.f32.xlu0 %v68
    %v70 = vpop.xlane.xlu0 %69
    %v71 = vrcp.pop %v70
    %v72 = vmul.f32 %v67, %v71
    %73 = vst.msk [vmem:[#allocation8] sm:$0x1] %vm61, %v72
    // Predicated region
    $region18: #{tpu_custom_call.1} parent=1 // pred_check
      _
    $region19: #{tpu_custom_call.1} parent=1 // pred_check_branch
      %75 = sbr.rel (0) target = $region21
    $region20: #{tpu_custom_call.1} parent=1 // pred_region
      %77 = vsyncadd [#allocation4], 0
      %s79 = sshll.u32 [#allocation7], 4
      %s80 = int_to_ptr.vmem [resolvable:$true] %s79
      %s81 = sshll.u32 %s2, 4
      %s82 = int_to_ptr.hbm [resolvable:$true] %s81
      %84 = dma.vmem_to_hbm [thread:$0]  %s80, 128, %s82, [#allocation4]
    $region21: #{tpu_custom_call.1} parent=1 // pred_fallthru
      _
    // Predicated region
    $region22: #{tpu_custom_call.1} parent=1 // pred_check
      _
    $region23: #{tpu_custom_call.1} parent=1 // pred_check_branch
      %86 = sbr.rel (0) target = $region25
    $region24: #{tpu_custom_call.1} parent=1 // pred_region
      %88 = vsyncadd [#allocation9], 0
      %s90 = sshll.u32 [#allocation8], 4
      %s91 = int_to_ptr.vmem [resolvable:$true] %s90
      %s92 = sshll.u32 %s3, 4
      %s93 = int_to_ptr.hbm [resolvable:$true] %s92
      %95 = dma.vmem_to_hbm [thread:$0]  %s91, 16, %s93, [#allocation9]
    $region25: #{tpu_custom_call.1} parent=1 // pred_fallthru
      _
    // Predicated region
    $region26: #{tpu_custom_call.1} parent=1 // pred_check
      _
    $region27: #{tpu_custom_call.1} parent=1 // pred_check_branch
      %97 = sbr.rel (0) target = $region29
    $region28: #{tpu_custom_call.1} parent=1 // pred_region
      %99 = dma.done [#allocation4], 128
    $region29: #{tpu_custom_call.1} parent=1 // pred_fallthru
      _
    // Predicated region
    $region30: #{tpu_custom_call.1} parent=1 // pred_check
      _
    $region31: #{tpu_custom_call.1} parent=1 // pred_check_branch
      %101 = sbr.rel (0) target = $region33
    $region32: #{tpu_custom_call.1} parent=1 // pred_region
      %103 = dma.done [#allocation9], 16
    $region33: #{tpu_custom_call.1} parent=1 // pred_fallthru
      _
    %104 = vsyncpa [#allocation3], 1
    %105 = vsyncpa [#allocation6], 1
    %106 = vsyncpa [#allocation4], 1
    %107 = vsyncpa [#allocation9], 1

</llo_original>
